<compile_context>
chip_gen: v6e
topology: v6e:2x2x1
jax: 0.10.0
libtpu: 0.0.40
codegen_flags: <defaults>
</compile_context>

<pallas_src>
import functools

import jax
import jax.numpy as jnp
import numpy as np
from jax.experimental import pallas as pl
from jax.experimental.pallas import tpu as pltpu

EPS = 1e-5
# Tap order must match the OIHW -> (Cout, kh, kw, Cin) -> (Cout, 9*Cin) weight
# reshape: kh (== dh+1) outer, kw (== dw+1) inner.
TAPS = tuple((dh, dw) for dh in (-1, 0, 1) for dw in (-1, 0, 1))


def _residual_block_kernel(x_ref, m_ref, w1_ref, g1_ref, be1_ref,
                           w2_ref, g2_ref, be2_ref, o_ref, *, W, M):
    # x_ref : (C, M)   input activations; channels on sublanes, M = N*H*W lanes
    # m_ref : (9, M)   per-tap 0/1 validity masks (zero padding at H/W borders)
    # w*_ref: (C, 9C)  conv weights as (Cout, kh*kw*Cin)
    # g*/be*: (C, 1)   BN gamma / beta column vectors
    # o_ref : (C, M)   output
    f32 = jnp.float32
    x = x_ref[...]

    def conv3x3(act, w_mat):
        # Shift-and-mask im2col: every tap is a static lane-roll of the flat
        # (C, M) activation times a precomputed validity mask; all 9 taps are
        # stacked along the contraction axis -> one wide-K (K = 9C) MXU dot.
        parts = []
        for t, (dh, dw) in enumerate(TAPS):
            s = dh * W + dw
            shifted = act if s == 0 else pltpu.roll(act, shift=(-s) % M, axis=1)
            parts.append(shifted * m_ref[t:t + 1, :])
        patches = jnp.concatenate(parts, axis=0)                 # (9C, M)
        return jnp.dot(w_mat, patches, preferred_element_type=f32)

    def bn_train(y, gamma, beta):
        # Training-mode batch norm over the lane (N*H*W) axis, with
        # gamma * rsqrt(var + eps) folded into a single per-channel scale.
        mean = jnp.mean(y, axis=1, keepdims=True)
        centered = y - mean
        var = jnp.mean(centered * centered, axis=1, keepdims=True)
        scale = gamma * jax.lax.rsqrt(var + EPS)
        return centered * scale + beta

    # ---- conv1 -> bn1 -> relu  (conv bias omitted: cancels in train-mode BN)
    out1 = jnp.maximum(
        bn_train(conv3x3(x, w1_ref[...]), g1_ref[...], be1_ref[...]), 0.0)

    # ---- conv2 -> bn2 -> +residual -> relu
    out2 = bn_train(conv3x3(out1, w2_ref[...]), g2_ref[...], be2_ref[...])
    o_ref[...] = jnp.maximum(out2 + x, 0.0)


def residual_block_pallas(x_nchw, params):
    """x_nchw: (N, C, H, W) float32.  params: (w1,b1,g1,be1,w2,b2,g2,be2) in
    PyTorch layouts (conv weights OIHW).  Conv biases are ignored: they cancel
    exactly inside training-mode BatchNorm."""
    w1, _b1, g1, be1, w2, _b2, g2, be2 = params
    N, C, H, W = x_nchw.shape
    M = N * H * W

    # Channels-leading, flattened spatial on the lane axis.
    x2d = jnp.transpose(x_nchw, (1, 0, 2, 3)).reshape(C, M).astype(jnp.float32)

    # OIHW -> (Cout, kh, kw, Cin) -> (Cout, 9*Cin), matching TAPS ordering.
    def wmat(w):
        return jnp.transpose(w, (0, 2, 3, 1)).reshape(C, 9 * C).astype(jnp.float32)

    col = lambda v: v.reshape(C, 1).astype(jnp.float32)

    # Per-tap validity masks over the flattened (N, H, W) index (zero padding).
    hh = jnp.arange(H)[:, None]
    ww = jnp.arange(W)[None, :]
    masks = []
    for dh, dw in TAPS:
        valid = ((hh + dh >= 0) & (hh + dh < H) &
                 (ww + dw >= 0) & (ww + dw < W)).astype(jnp.float32)
        masks.append(jnp.broadcast_to(valid, (N, H, W)).reshape(M))
    masks = jnp.stack(masks, axis=0)                             # (9, M)

    vmem = pl.BlockSpec(memory_space=pltpu.MemorySpace.VMEM)
    flops = 2 * (2 * (9 * C) * C * M)            # two 3x3 convs as wide dots
    bytes_accessed = 4 * (3 * C * M + 9 * M + 2 * 9 * C * C + 4 * C)

    kernel = functools.partial(_residual_block_kernel, W=W, M=M)
    out2d = pl.pallas_call(
        kernel,
        out_shape=jax.ShapeDtypeStruct((C, M), jnp.float32),
        in_specs=[vmem] * 8,
        out_specs=vmem,
        compiler_params=pltpu.CompilerParams(vmem_limit_bytes=32 * 1024 * 1024),
        cost_estimate=pl.CostEstimate(flops=flops, transcendentals=0,
                                      bytes_accessed=bytes_accessed),
    )(x2d, masks, wmat(w1), col(g1), col(be1), wmat(w2), col(g2), col(be2))

    return jnp.transpose(out2d.reshape(C, N, H, W), (1, 0, 2, 3))  # NCHW


# ----------------------------- pure-JAX reference -----------------------------
def residual_block_ref(x, params):
    w1, b1, g1, be1, w2, b2, g2, be2 = params

    def conv(h, w, b):
        y = jax.lax.conv_general_dilated(
            h, w, window_strides=(1, 1), padding=((1, 1), (1, 1)),
            dimension_numbers=('NCHW', 'OIHW', 'NCHW'))
        return y + b[None, :, None, None]

    def bn(h, g, be):
        mean = jnp.mean(h, axis=(0, 2, 3), keepdims=True)
        var = jnp.mean((h - mean) ** 2, axis=(0, 2, 3), keepdims=True)
        return ((h - mean) * jax.lax.rsqrt(var + EPS)
                * g[None, :, None, None] + be[None, :, None, None])

    out = jax.nn.relu(bn(conv(x, w1, b1), g1, be1))
    out = bn(conv(out, w2, b2), g2, be2)
    return jax.nn.relu(out + x)


if __name__ == "__main__":
    key = jax.random.PRNGKey(0)
    N, C, H, W = 2, 4, 16, 16
    k_x, k_w1, k_b1, k_w2, k_b2 = jax.random.split(key, 5)

    x = jax.random.normal(k_x, (N, C, H, W), dtype=jnp.float32)

    # Deterministic parameter init (PyTorch-style shapes; BN gamma=1, beta=0).
    fan_in = C * 3 * 3
    bound = 1.0 / np.sqrt(fan_in)
    w1 = jax.random.uniform(k_w1, (C, C, 3, 3), jnp.float32, -bound, bound)
    b1 = jax.random.uniform(k_b1, (C,), jnp.float32, -bound, bound)
    w2 = jax.random.uniform(k_w2, (C, C, 3, 3), jnp.float32, -bound, bound)
    b2 = jax.random.uniform(k_b2, (C,), jnp.float32, -bound, bound)
    g1 = jnp.ones((C,), jnp.float32)
    be1 = jnp.zeros((C,), jnp.float32)
    g2 = jnp.ones((C,), jnp.float32)
    be2 = jnp.zeros((C,), jnp.float32)
    params = (w1, b1, g1, be1, w2, b2, g2, be2)

    out = jax.block_until_ready(residual_block_pallas(x, params))
    ref = jax.block_until_ready(residual_block_ref(x, params))

    assert out.shape == (N, C, H, W)
    np.testing.assert_allclose(np.asarray(out), np.asarray(ref),
                               rtol=1e-4, atol=1e-4)
    print("KERNEL_OK")
</pallas_src>

<mosaic_0001>
module attributes {stable_mosaic.version = 11 : i64} {
  func.func @_residual_block_kernel(%arg0: memref<4x512xf32, #tpu.memory_space<vmem>>, %arg1: memref<9x512xf32, #tpu.memory_space<vmem>>, %arg2: memref<4x36xf32, #tpu.memory_space<vmem>>, %arg3: memref<4x1xf32, #tpu.memory_space<vmem>>, %arg4: memref<4x1xf32, #tpu.memory_space<vmem>>, %arg5: memref<4x36xf32, #tpu.memory_space<vmem>>, %arg6: memref<4x1xf32, #tpu.memory_space<vmem>>, %arg7: memref<4x1xf32, #tpu.memory_space<vmem>>, %arg8: memref<4x512xf32, #tpu.memory_space<vmem>>) attributes {dimension_semantics = [], scalar_prefetch = 0 : i64, scratch_operands = 0 : i64, tpu.core_type = #tpu.core_type<tc>} {
    %c0 = arith.constant 0 : index
    %c0_0 = arith.constant 0 : index
    %0 = vector.load %arg0[%c0, %c0_0] : memref<4x512xf32, #tpu.memory_space<vmem>>, vector<4x512xf32>
    %c0_1 = arith.constant 0 : index
    %c0_2 = arith.constant 0 : index
    %1 = vector.load %arg2[%c0_1, %c0_2] : memref<4x36xf32, #tpu.memory_space<vmem>>, vector<4x36xf32>
    %c17_i32 = arith.constant 17 : i32
    %2 = tpu.dynamic_rotate %0 by %c17_i32 dim 1 : vector<4x512xf32>, i32 -> vector<4x512xf32>
    %c0_3 = arith.constant 0 : index
    %c0_4 = arith.constant 0 : index
    %3 = vector.load %arg1[%c0_3, %c0_4] : memref<9x512xf32, #tpu.memory_space<vmem>>, vector<1x512xf32>
    %4 = vector.broadcast %3 : vector<1x512xf32> to vector<4x512xf32>
    %5 = arith.mulf %2, %4 : vector<4x512xf32>
    %c16_i32 = arith.constant 16 : i32
    %6 = tpu.dynamic_rotate %0 by %c16_i32 dim 1 : vector<4x512xf32>, i32 -> vector<4x512xf32>
    %c1 = arith.constant 1 : index
    %c0_5 = arith.constant 0 : index
    %7 = vector.load %arg1[%c1, %c0_5] : memref<9x512xf32, #tpu.memory_space<vmem>>, vector<1x512xf32>
    %8 = vector.broadcast %7 : vector<1x512xf32> to vector<4x512xf32>
    %9 = arith.mulf %6, %8 : vector<4x512xf32>
    %c15_i32 = arith.constant 15 : i32
    %10 = tpu.dynamic_rotate %0 by %c15_i32 dim 1 : vector<4x512xf32>, i32 -> vector<4x512xf32>
    %c2 = arith.constant 2 : index
    %c0_6 = arith.constant 0 : index
    %11 = vector.load %arg1[%c2, %c0_6] : memref<9x512xf32, #tpu.memory_space<vmem>>, vector<1x512xf32>
    %12 = vector.broadcast %11 : vector<1x512xf32> to vector<4x512xf32>
    %13 = arith.mulf %10, %12 : vector<4x512xf32>
    %c1_i32 = arith.constant 1 : i32
    %14 = tpu.dynamic_rotate %0 by %c1_i32 dim 1 : vector<4x512xf32>, i32 -> vector<4x512xf32>
    %c3 = arith.constant 3 : index
    %c0_7 = arith.constant 0 : index
    %15 = vector.load %arg1[%c3, %c0_7] : memref<9x512xf32, #tpu.memory_space<vmem>>, vector<1x512xf32>
    %16 = vector.broadcast %15 : vector<1x512xf32> to vector<4x512xf32>
    %17 = arith.mulf %14, %16 : vector<4x512xf32>
    %c4 = arith.constant 4 : index
    %c0_8 = arith.constant 0 : index
    %18 = vector.load %arg1[%c4, %c0_8] : memref<9x512xf32, #tpu.memory_space<vmem>>, vector<1x512xf32>
    %19 = vector.broadcast %18 : vector<1x512xf32> to vector<4x512xf32>
    %20 = arith.mulf %0, %19 : vector<4x512xf32>
    %c511_i32 = arith.constant 511 : i32
    %21 = tpu.dynamic_rotate %0 by %c511_i32 dim 1 : vector<4x512xf32>, i32 -> vector<4x512xf32>
    %c5 = arith.constant 5 : index
    %c0_9 = arith.constant 0 : index
    %22 = vector.load %arg1[%c5, %c0_9] : memref<9x512xf32, #tpu.memory_space<vmem>>, vector<1x512xf32>
    %23 = vector.broadcast %22 : vector<1x512xf32> to vector<4x512xf32>
    %24 = arith.mulf %21, %23 : vector<4x512xf32>
    %c497_i32 = arith.constant 497 : i32
    %25 = tpu.dynamic_rotate %0 by %c497_i32 dim 1 : vector<4x512xf32>, i32 -> vector<4x512xf32>
    %c6 = arith.constant 6 : index
    %c0_10 = arith.constant 0 : index
    %26 = vector.load %arg1[%c6, %c0_10] : memref<9x512xf32, #tpu.memory_space<vmem>>, vector<1x512xf32>
    %27 = vector.broadcast %26 : vector<1x512xf32> to vector<4x512xf32>
    %28 = arith.mulf %25, %27 : vector<4x512xf32>
    %c496_i32 = arith.constant 496 : i32
    %29 = tpu.dynamic_rotate %0 by %c496_i32 dim 1 : vector<4x512xf32>, i32 -> vector<4x512xf32>
    %c7 = arith.constant 7 : index
    %c0_11 = arith.constant 0 : index
    %30 = vector.load %arg1[%c7, %c0_11] : memref<9x512xf32, #tpu.memory_space<vmem>>, vector<1x512xf32>
    %31 = vector.broadcast %30 : vector<1x512xf32> to vector<4x512xf32>
    %32 = arith.mulf %29, %31 : vector<4x512xf32>
    %c495_i32 = arith.constant 495 : i32
    %33 = tpu.dynamic_rotate %0 by %c495_i32 dim 1 : vector<4x512xf32>, i32 -> vector<4x512xf32>
    %c8 = arith.constant 8 : index
    %c0_12 = arith.constant 0 : index
    %34 = vector.load %arg1[%c8, %c0_12] : memref<9x512xf32, #tpu.memory_space<vmem>>, vector<1x512xf32>
    %35 = vector.broadcast %34 : vector<1x512xf32> to vector<4x512xf32>
    %36 = arith.mulf %33, %35 : vector<4x512xf32>
    %37 = tpu.concatenate %5, %9, %13, %17, %20, %24, %28, %32, %36 in 0 : vector<4x512xf32>, vector<4x512xf32>, vector<4x512xf32>, vector<4x512xf32>, vector<4x512xf32>, vector<4x512xf32>, vector<4x512xf32>, vector<4x512xf32>, vector<4x512xf32> -> vector<36x512xf32>
    %cst = arith.constant dense<0.000000e+00> : vector<4x512xf32>
    %38 = tpu.matmul %1, %37, %cst {dimension_numbers = #tpu.dot_dimension_numbers<[1], [0], [0], [1], [0, 0, 1, 1], [], []>} : vector<4x36xf32>, vector<36x512xf32>, vector<4x512xf32> -> vector<4x512xf32>
    %c0_13 = arith.constant 0 : index
    %c0_14 = arith.constant 0 : index
    %39 = vector.load %arg3[%c0_13, %c0_14] : memref<4x1xf32, #tpu.memory_space<vmem>>, vector<4x1xf32>
    %c0_15 = arith.constant 0 : index
    %c0_16 = arith.constant 0 : index
    %40 = vector.load %arg4[%c0_15, %c0_16] : memref<4x1xf32, #tpu.memory_space<vmem>>, vector<4x1xf32>
    %cst_17 = arith.constant dense<0.000000e+00> : vector<4xf32>
    %41 = vector.multi_reduction <add>, %38, %cst_17 [1] : vector<4x512xf32> to vector<4xf32>
    %42 = vector.shape_cast %41 : vector<4xf32> to vector<4x1xf32>
    %cst_18 = arith.constant 5.120000e+02 : f32
    %43 = vector.broadcast %cst_18 : f32 to vector<4x1xf32>
    %44 = arith.divf %42, %43 : vector<4x1xf32>
    %45 = vector.broadcast %44 : vector<4x1xf32> to vector<4x512xf32>
    %46 = arith.subf %38, %45 : vector<4x512xf32>
    %47 = arith.mulf %46, %46 : vector<4x512xf32>
    %cst_19 = arith.constant dense<0.000000e+00> : vector<4xf32>
    %48 = vector.multi_reduction <add>, %47, %cst_19 [1] : vector<4x512xf32> to vector<4xf32>
    %49 = vector.shape_cast %48 : vector<4xf32> to vector<4x1xf32>
    %cst_20 = arith.constant 5.120000e+02 : f32
    %50 = vector.broadcast %cst_20 : f32 to vector<4x1xf32>
    %51 = arith.divf %49, %50 : vector<4x1xf32>
    %cst_21 = arith.constant 9.99999974E-6 : f32
    %52 = vector.broadcast %cst_21 : f32 to vector<4x1xf32>
    %53 = arith.addf %51, %52 : vector<4x1xf32>
    %54 = math.rsqrt %53 : vector<4x1xf32>
    %55 = arith.mulf %39, %54 : vector<4x1xf32>
    %56 = vector.broadcast %55 : vector<4x1xf32> to vector<4x512xf32>
    %57 = arith.mulf %46, %56 : vector<4x512xf32>
    %58 = vector.broadcast %40 : vector<4x1xf32> to vector<4x512xf32>
    %59 = arith.addf %57, %58 : vector<4x512xf32>
    %cst_22 = arith.constant 0.000000e+00 : f32
    %60 = vector.broadcast %cst_22 : f32 to vector<4x512xf32>
    %61 = arith.maximumf %59, %60 : vector<4x512xf32>
    %c0_23 = arith.constant 0 : index
    %c0_24 = arith.constant 0 : index
    %62 = vector.load %arg5[%c0_23, %c0_24] : memref<4x36xf32, #tpu.memory_space<vmem>>, vector<4x36xf32>
    %c17_i32_25 = arith.constant 17 : i32
    %63 = tpu.dynamic_rotate %61 by %c17_i32_25 dim 1 : vector<4x512xf32>, i32 -> vector<4x512xf32>
    %c0_26 = arith.constant 0 : index
    %c0_27 = arith.constant 0 : index
    %64 = vector.load %arg1[%c0_26, %c0_27] : memref<9x512xf32, #tpu.memory_space<vmem>>, vector<1x512xf32>
    %65 = vector.broadcast %64 : vector<1x512xf32> to vector<4x512xf32>
    %66 = arith.mulf %63, %65 : vector<4x512xf32>
    %c16_i32_28 = arith.constant 16 : i32
    %67 = tpu.dynamic_rotate %61 by %c16_i32_28 dim 1 : vector<4x512xf32>, i32 -> vector<4x512xf32>
    %c1_29 = arith.constant 1 : index
    %c0_30 = arith.constant 0 : index
    %68 = vector.load %arg1[%c1_29, %c0_30] : memref<9x512xf32, #tpu.memory_space<vmem>>, vector<1x512xf32>
    %69 = vector.broadcast %68 : vector<1x512xf32> to vector<4x512xf32>
    %70 = arith.mulf %67, %69 : vector<4x512xf32>
    %c15_i32_31 = arith.constant 15 : i32
    %71 = tpu.dynamic_rotate %61 by %c15_i32_31 dim 1 : vector<4x512xf32>, i32 -> vector<4x512xf32>
    %c2_32 = arith.constant 2 : index
    %c0_33 = arith.constant 0 : index
    %72 = vector.load %arg1[%c2_32, %c0_33] : memref<9x512xf32, #tpu.memory_space<vmem>>, vector<1x512xf32>
    %73 = vector.broadcast %72 : vector<1x512xf32> to vector<4x512xf32>
    %74 = arith.mulf %71, %73 : vector<4x512xf32>
    %c1_i32_34 = arith.constant 1 : i32
    %75 = tpu.dynamic_rotate %61 by %c1_i32_34 dim 1 : vector<4x512xf32>, i32 -> vector<4x512xf32>
    %c3_35 = arith.constant 3 : index
    %c0_36 = arith.constant 0 : index
    %76 = vector.load %arg1[%c3_35, %c0_36] : memref<9x512xf32, #tpu.memory_space<vmem>>, vector<1x512xf32>
    %77 = vector.broadcast %76 : vector<1x512xf32> to vector<4x512xf32>
    %78 = arith.mulf %75, %77 : vector<4x512xf32>
    %c4_37 = arith.constant 4 : index
    %c0_38 = arith.constant 0 : index
    %79 = vector.load %arg1[%c4_37, %c0_38] : memref<9x512xf32, #tpu.memory_space<vmem>>, vector<1x512xf32>
    %80 = vector.broadcast %79 : vector<1x512xf32> to vector<4x512xf32>
    %81 = arith.mulf %61, %80 : vector<4x512xf32>
    %c511_i32_39 = arith.constant 511 : i32
    %82 = tpu.dynamic_rotate %61 by %c511_i32_39 dim 1 : vector<4x512xf32>, i32 -> vector<4x512xf32>
    %c5_40 = arith.constant 5 : index
    %c0_41 = arith.constant 0 : index
    %83 = vector.load %arg1[%c5_40, %c0_41] : memref<9x512xf32, #tpu.memory_space<vmem>>, vector<1x512xf32>
    %84 = vector.broadcast %83 : vector<1x512xf32> to vector<4x512xf32>
    %85 = arith.mulf %82, %84 : vector<4x512xf32>
    %c497_i32_42 = arith.constant 497 : i32
    %86 = tpu.dynamic_rotate %61 by %c497_i32_42 dim 1 : vector<4x512xf32>, i32 -> vector<4x512xf32>
    %c6_43 = arith.constant 6 : index
    %c0_44 = arith.constant 0 : index
    %87 = vector.load %arg1[%c6_43, %c0_44] : memref<9x512xf32, #tpu.memory_space<vmem>>, vector<1x512xf32>
    %88 = vector.broadcast %87 : vector<1x512xf32> to vector<4x512xf32>
    %89 = arith.mulf %86, %88 : vector<4x512xf32>
    %c496_i32_45 = arith.constant 496 : i32
    %90 = tpu.dynamic_rotate %61 by %c496_i32_45 dim 1 : vector<4x512xf32>, i32 -> vector<4x512xf32>
    %c7_46 = arith.constant 7 : index
    %c0_47 = arith.constant 0 : index
    %91 = vector.load %arg1[%c7_46, %c0_47] : memref<9x512xf32, #tpu.memory_space<vmem>>, vector<1x512xf32>
    %92 = vector.broadcast %91 : vector<1x512xf32> to vector<4x512xf32>
    %93 = arith.mulf %90, %92 : vector<4x512xf32>
    %c495_i32_48 = arith.constant 495 : i32
    %94 = tpu.dynamic_rotate %61 by %c495_i32_48 dim 1 : vector<4x512xf32>, i32 -> vector<4x512xf32>
    %c8_49 = arith.constant 8 : index
    %c0_50 = arith.constant 0 : index
    %95 = vector.load %arg1[%c8_49, %c0_50] : memref<9x512xf32, #tpu.memory_space<vmem>>, vector<1x512xf32>
    %96 = vector.broadcast %95 : vector<1x512xf32> to vector<4x512xf32>
    %97 = arith.mulf %94, %96 : vector<4x512xf32>
    %98 = tpu.concatenate %66, %70, %74, %78, %81, %85, %89, %93, %97 in 0 : vector<4x512xf32>, vector<4x512xf32>, vector<4x512xf32>, vector<4x512xf32>, vector<4x512xf32>, vector<4x512xf32>, vector<4x512xf32>, vector<4x512xf32>, vector<4x512xf32> -> vector<36x512xf32>
    %cst_51 = arith.constant dense<0.000000e+00> : vector<4x512xf32>
    %99 = tpu.matmul %62, %98, %cst_51 {dimension_numbers = #tpu.dot_dimension_numbers<[1], [0], [0], [1], [0, 0, 1, 1], [], []>} : vector<4x36xf32>, vector<36x512xf32>, vector<4x512xf32> -> vector<4x512xf32>
    %c0_52 = arith.constant 0 : index
    %c0_53 = arith.constant 0 : index
    %100 = vector.load %arg6[%c0_52, %c0_53] : memref<4x1xf32, #tpu.memory_space<vmem>>, vector<4x1xf32>
    %c0_54 = arith.constant 0 : index
    %c0_55 = arith.constant 0 : index
    %101 = vector.load %arg7[%c0_54, %c0_55] : memref<4x1xf32, #tpu.memory_space<vmem>>, vector<4x1xf32>
    %cst_56 = arith.constant dense<0.000000e+00> : vector<4xf32>
    %102 = vector.multi_reduction <add>, %99, %cst_56 [1] : vector<4x512xf32> to vector<4xf32>
    %103 = vector.shape_cast %102 : vector<4xf32> to vector<4x1xf32>
    %cst_57 = arith.constant 5.120000e+02 : f32
    %104 = vector.broadcast %cst_57 : f32 to vector<4x1xf32>
    %105 = arith.divf %103, %104 : vector<4x1xf32>
    %106 = vector.broadcast %105 : vector<4x1xf32> to vector<4x512xf32>
    %107 = arith.subf %99, %106 : vector<4x512xf32>
    %108 = arith.mulf %107, %107 : vector<4x512xf32>
    %cst_58 = arith.constant dense<0.000000e+00> : vector<4xf32>
    %109 = vector.multi_reduction <add>, %108, %cst_58 [1] : vector<4x512xf32> to vector<4xf32>
    %110 = vector.shape_cast %109 : vector<4xf32> to vector<4x1xf32>
    %cst_59 = arith.constant 5.120000e+02 : f32
    %111 = vector.broadcast %cst_59 : f32 to vector<4x1xf32>
    %112 = arith.divf %110, %111 : vector<4x1xf32>
    %cst_60 = arith.constant 9.99999974E-6 : f32
    %113 = vector.broadcast %cst_60 : f32 to vector<4x1xf32>
    %114 = arith.addf %112, %113 : vector<4x1xf32>
    %115 = math.rsqrt %114 : vector<4x1xf32>
    %116 = arith.mulf %100, %115 : vector<4x1xf32>
    %117 = vector.broadcast %116 : vector<4x1xf32> to vector<4x512xf32>
    %118 = arith.mulf %107, %117 : vector<4x512xf32>
    %119 = vector.broadcast %101 : vector<4x1xf32> to vector<4x512xf32>
    %120 = arith.addf %118, %119 : vector<4x512xf32>
    %121 = arith.addf %120, %0 : vector<4x512xf32>
    %cst_61 = arith.constant 0.000000e+00 : f32
    %122 = vector.broadcast %cst_61 : f32 to vector<4x512xf32>
    %123 = arith.maximumf %121, %122 : vector<4x512xf32>
    %c0_62 = arith.constant 0 : index
    %c0_63 = arith.constant 0 : index
    %124 = vector.load %arg8[%c0_62, %c0_63] : memref<4x512xf32, #tpu.memory_space<vmem>>, vector<4x512xf32>
    tpu.vector_store %arg8[%c0_62, %c0_63], %123 {strides = array<i32>} : memref<4x512xf32, #tpu.memory_space<vmem>>, vector<4x512xf32>,
    return
  }
}

</mosaic_0001>

<llo_original>
// kernel: tpu_custom_call.1
$region0: #{tpu_custom_call.1}
  #allocation0 [shape = 'u32[]', space=smem, size = 0x4, offset = 0x4, fixed_abs, tag = 'smem constant byte address 0x4 - core index']
  #allocation1 [shape = 'u32[144,128]{1,0:T(1,128)}', space=vmem, size = 0x12000, scoped, tag = 'internal scratch']
  %s0 = inlined_call_operand.vmem [shape: f32[4,512], index: 0, kind: input, shape index: {}]
  %s1 = inlined_call_operand.hbm [shape: f32[9,512], index: 1, kind: input, shape index: {}]
  %s2 = inlined_call_operand.vmem [shape: f32[4,36], index: 2, kind: input, shape index: {}]
  %s3 = inlined_call_operand.vmem [shape: f32[4,1], index: 3, kind: input, shape index: {}]
  %s4 = inlined_call_operand.vmem [shape: f32[4,1], index: 4, kind: input, shape index: {}]
  %s5 = inlined_call_operand.vmem [shape: f32[4,36], index: 5, kind: input, shape index: {}]
  %s6 = inlined_call_operand.vmem [shape: f32[4,1], index: 6, kind: input, shape index: {}]
  %s7 = inlined_call_operand.vmem [shape: f32[4,1], index: 7, kind: input, shape index: {}]
  %s8 = inlined_call_operand.hbm [shape: f32[4,512], index: 8, kind: output, shape index: {}]
  %s9 = sld [smem:[#allocation0]]
  $region46: #{tpu_custom_call.1} parent=0
    _
  %s11 = ssub.s32 1, %s9
  %s12 = scalar_select 0, %s11, %s9
  $region1: #{tpu_custom_call.1} parent=0
    #allocation2 [shape = 'u8[32768]{0}', space=vmem, size = 0x8000, scoped, tag = 'input window, operand 1, single buffered']
    #allocation3 [shape = 's32[1]{0}', space=sflag, size = 0x4, scoped, tag = 'scoped memory for tpu_custom_call.1']
    #allocation4 [shape = 's32[1]{0}', space=sflag, size = 0x4, scoped, tag = 'scoped memory for tpu_custom_call.1']
    #allocation5 [shape = 'u8[8192]{0}', space=vmem, size = 0x2000, scoped, tag = 'output window, operand 0, single buffered']
    %13 = vsyncpa [#allocation3], 0
    %14 = vsyncpa [#allocation4], 0
    // Predicated region
    $region2: #{tpu_custom_call.1} parent=1 // pred_check
      _
    $region3: #{tpu_custom_call.1} parent=1 // pred_check_branch
      %16 = sbr.rel (0) target = $region5
    $region4: #{tpu_custom_call.1} parent=1 // pred_region
      _
    $region5: #{tpu_custom_call.1} parent=1 // pred_fallthru
      _
    // Predicated region
    $region6: #{tpu_custom_call.1} parent=1 // pred_check
      _
    $region7: #{tpu_custom_call.1} parent=1 // pred_check_branch
      %18 = sbr.rel (0) target = $region9
    $region8: #{tpu_custom_call.1} parent=1 // pred_region
      %s20 = ssub.s32 1024, 1024
      %21 = vsyncadd [#allocation3], %s20
      %s22 = sshll.u32 [#allocation2], 4
      %s23 = int_to_ptr.vmem [resolvable:$true] %s22
      %28 = dma.hbm_to_vmem [thread:$0]  %s1, 1024, %s23, [#allocation3], 512, 512, 32
    $region9: #{tpu_custom_call.1} parent=1 // pred_fallthru
      _
    // Predicated region
    $region10: #{tpu_custom_call.1} parent=1 // pred_check
      _
    $region11: #{tpu_custom_call.1} parent=1 // pred_check_branch
      %30 = sbr.rel (0) target = $region13
    $region12: #{tpu_custom_call.1} parent=1 // pred_region
      _
    $region13: #{tpu_custom_call.1} parent=1 // pred_fallthru
      _
    // Predicated region
    $region14: #{tpu_custom_call.1} parent=1 // pred_check
      _
    $region15: #{tpu_custom_call.1} parent=1 // pred_check_branch
      %32 = sbr.rel (0) target = $region17
    $region16: #{tpu_custom_call.1} parent=1 // pred_region
      _
    $region17: #{tpu_custom_call.1} parent=1 // pred_fallthru
      _
    // Predicated region
    $region18: #{tpu_custom_call.1} parent=1 // pred_check
      _
    $region19: #{tpu_custom_call.1} parent=1 // pred_check_branch
      %34 = sbr.rel (0) target = $region21
    $region20: #{tpu_custom_call.1} parent=1 // pred_region
      _
    $region21: #{tpu_custom_call.1} parent=1 // pred_fallthru
      _
    // Predicated region
    $region22: #{tpu_custom_call.1} parent=1 // pred_check
      _
    $region23: #{tpu_custom_call.1} parent=1 // pred_check_branch
      %36 = sbr.rel (0) target = $region25
    $region24: #{tpu_custom_call.1} parent=1 // pred_region
      _
    $region25: #{tpu_custom_call.1} parent=1 // pred_fallthru
      _
    // Predicated region
    $region26: #{tpu_custom_call.1} parent=1 // pred_check
      _
    $region27: #{tpu_custom_call.1} parent=1 // pred_check_branch
      %38 = sbr.rel (0) target = $region29
    $region28: #{tpu_custom_call.1} parent=1 // pred_region
      _
    $region29: #{tpu_custom_call.1} parent=1 // pred_fallthru
      _
    // Predicated region
    $region30: #{tpu_custom_call.1} parent=1 // pred_check
      _
    $region31: #{tpu_custom_call.1} parent=1 // pred_check_branch
      %40 = sbr.rel (0) target = $region33
    $region32: #{tpu_custom_call.1} parent=1 // pred_region
      _
    $region33: #{tpu_custom_call.1} parent=1 // pred_fallthru
      _
    // Predicated region
    $region34: #{tpu_custom_call.1} parent=1 // pred_check
      _
    $region35: #{tpu_custom_call.1} parent=1 // pred_check_branch
      %42 = sbr.rel (0) target = $region37
    $region36: #{tpu_custom_call.1} parent=1 // pred_region
      %43 = dma.done [#allocation3], 1024
    $region37: #{tpu_custom_call.1} parent=1 // pred_fallthru
      _
    %v44 = vld [vmem:[%s0] sm:$0xff]
    %v45 = vld [vmem:[%s0 + $0x8] sm:$0xff]
    %v46 = vld [vmem:[%s2] sm:$0xf]
    %v49 = vcombine.high %v44, %v44
    %v50 = vcombine.high %v45, %v45
    %53 = vrot.lane.b32.xlu0 %v44, 17
    %v54 = vpop.permute.xlu0 %53
    %55 = vrot.lane.b32.xlu0 %v49, 17
    %v56 = vpop.permute.xlu0 %55
    %57 = vrot.lane.b32.xlu0 %v45, 17
    %v58 = vpop.permute.xlu0 %57
    %59 = vrot.lane.b32.xlu0 %v50, 17
    %v60 = vpop.permute.xlu0 %59
    %v61 = vlaneseq
    %v62 = vand.u32 %v61, 127
    %vm63 = vcmp.lt.s32.totalorder %v62, 17
    %v64 = vsel %vm63, %v58, %v60
    %v65 = vsel %vm63, %v56, %v58
    %v66 = vsel %vm63, %v54, %v56
    %v67 = vsel %vm63, %v60, %v54
    %v68 = vld [vmem:[#allocation2] ss:$8 sm:$0xf]
    %v70 = vlaneseq
    %v71 = vshrl.u32 %v70, 7
    %v72 = vsub.s32 0, %v71
    %v73 = vrot.slane %v68, %v72
    %v74 = vlaneseq
    %v75 = vshrl.u32 %v74, 7
    %v76 = vsub.s32 1, %v75
    %v77 = vrot.slane %v68, %v76
    %v78 = vlaneseq
    %v79 = vshrl.u32 %v78, 7
    %v80 = vsub.s32 2, %v79
    %v81 = vrot.slane %v68, %v80
    %v82 = vlaneseq
    %v83 = vshrl.u32 %v82, 7
    %v84 = vsub.s32 3, %v83
    %v85 = vrot.slane %v68, %v84
    %v90 = vmul.f32 %v67, %v73
    %v91 = vmul.f32 %v66, %v77
    %v92 = vmul.f32 %v65, %v81
    %v93 = vmul.f32 %v64, %v85
    %94 = vrot.lane.b32.xlu0 %v44, 16
    %v95 = vpop.permute.xlu0 %94
    %96 = vrot.lane.b32.xlu0 %v49, 16
    %v97 = vpop.permute.xlu0 %96
    %98 = vrot.lane.b32.xlu0 %v45, 16
    %v99 = vpop.permute.xlu0 %98
    %100 = vrot.lane.b32.xlu0 %v50, 16
    %v101 = vpop.permute.xlu0 %100
    %vm102 = vcmp.lt.s32.totalorder %v62, 16
    %v103 = vsel %vm102, %v99, %v101
    %v104 = vsel %vm102, %v97, %v99
    %v105 = vsel %vm102, %v95, %v97
    %v106 = vsel %vm102, %v101, %v95
    %s107 = scalar_lea.vmem [#allocation2], 1
    %v108 = vld [vmem:[%s107] ss:$8 sm:$0xf]
    %v110 = vlaneseq
    %v111 = vshrl.u32 %v110, 7
    %v112 = vsub.s32 0, %v111
    %v113 = vrot.slane %v108, %v112
    %v114 = vlaneseq
    %v115 = vshrl.u32 %v114, 7
    %v116 = vsub.s32 1, %v115
    %v117 = vrot.slane %v108, %v116
    %v118 = vlaneseq
    %v119 = vshrl.u32 %v118, 7
    %v120 = vsub.s32 2, %v119
    %v121 = vrot.slane %v108, %v120
    %v122 = vlaneseq
    %v123 = vshrl.u32 %v122, 7
    %v124 = vsub.s32 3, %v123
    %v125 = vrot.slane %v108, %v124
    %v130 = vmul.f32 %v106, %v113
    %v131 = vmul.f32 %v105, %v117
    %v132 = vmul.f32 %v104, %v121
    %v133 = vmul.f32 %v103, %v125
    %134 = vrot.lane.b32.xlu0 %v44, 15
    %v135 = vpop.permute.xlu0 %134
    %136 = vrot.lane.b32.xlu0 %v49, 15
    %v137 = vpop.permute.xlu0 %136
    %138 = vrot.lane.b32.xlu0 %v45, 15
    %v139 = vpop.permute.xlu0 %138
    %140 = vrot.lane.b32.xlu0 %v50, 15
    %v141 = vpop.permute.xlu0 %140
    %vm142 = vcmp.lt.s32.totalorder %v62, 15
    %v143 = vsel %vm142, %v139, %v141
    %v144 = vsel %vm142, %v137, %v139
    %v145 = vsel %vm142, %v135, %v137
    %v146 = vsel %vm142, %v141, %v135
    %s147 = scalar_lea.vmem [#allocation2], 2
    %v148 = vld [vmem:[%s147] ss:$8 sm:$0xf]
    %v150 = vlaneseq
    %v151 = vshrl.u32 %v150, 7
    %v152 = vsub.s32 0, %v151
    %v153 = vrot.slane %v148, %v152
    %v154 = vlaneseq
    %v155 = vshrl.u32 %v154, 7
    %v156 = vsub.s32 1, %v155
    %v157 = vrot.slane %v148, %v156
    %v158 = vlaneseq
    %v159 = vshrl.u32 %v158, 7
    %v160 = vsub.s32 2, %v159
    %v161 = vrot.slane %v148, %v160
    %v162 = vlaneseq
    %v163 = vshrl.u32 %v162, 7
    %v164 = vsub.s32 3, %v163
    %v165 = vrot.slane %v148, %v164
    %v170 = vmul.f32 %v146, %v153
    %v171 = vmul.f32 %v145, %v157
    %v172 = vmul.f32 %v144, %v161
    %v173 = vmul.f32 %v143, %v165
    %174 = vrot.lane.b32.xlu0 %v44, 1
    %v175 = vpop.permute.xlu0 %174
    %176 = vrot.lane.b32.xlu0 %v49, 1
    %v177 = vpop.permute.xlu0 %176
    %178 = vrot.lane.b32.xlu0 %v45, 1
    %v179 = vpop.permute.xlu0 %178
    %180 = vrot.lane.b32.xlu0 %v50, 1
    %v181 = vpop.permute.xlu0 %180
    %vm182 = vcmp.lt.s32.totalorder %v62, 1
    %v183 = vsel %vm182, %v179, %v181
    %v184 = vsel %vm182, %v177, %v179
    %v185 = vsel %vm182, %v175, %v177
    %v186 = vsel %vm182, %v181, %v175
    %s187 = scalar_lea.vmem [#allocation2], 3
    %v188 = vld [vmem:[%s187] ss:$8 sm:$0xf]
    %v190 = vlaneseq
    %v191 = vshrl.u32 %v190, 7
    %v192 = vsub.s32 0, %v191
    %v193 = vrot.slane %v188, %v192
    %v194 = vlaneseq
    %v195 = vshrl.u32 %v194, 7
    %v196 = vsub.s32 1, %v195
    %v197 = vrot.slane %v188, %v196
    %v198 = vlaneseq
    %v199 = vshrl.u32 %v198, 7
    %v200 = vsub.s32 2, %v199
    %v201 = vrot.slane %v188, %v200
    %v202 = vlaneseq
    %v203 = vshrl.u32 %v202, 7
    %v204 = vsub.s32 3, %v203
    %v205 = vrot.slane %v188, %v204
    %v210 = vmul.f32 %v186, %v193
    %v211 = vmul.f32 %v185, %v197
    %v212 = vmul.f32 %v184, %v201
    %v213 = vmul.f32 %v183, %v205
    %s214 = scalar_lea.vmem [#allocation2], 4
    %v215 = vld [vmem:[%s214] ss:$8 sm:$0xf]
    %v217 = vlaneseq
    %v218 = vshrl.u32 %v217, 7
    %v219 = vsub.s32 0, %v218
    %v220 = vrot.slane %v215, %v219
    %v221 = vlaneseq
    %v222 = vshrl.u32 %v221, 7
    %v223 = vsub.s32 1, %v222
    %v224 = vrot.slane %v215, %v223
    %v225 = vlaneseq
    %v226 = vshrl.u32 %v225, 7
    %v227 = vsub.s32 2, %v226
    %v228 = vrot.slane %v215, %v227
    %v229 = vlaneseq
    %v230 = vshrl.u32 %v229, 7
    %v231 = vsub.s32 3, %v230
    %v232 = vrot.slane %v215, %v231
    %v237 = vcombine.low %v220, %v224
    %v238 = vcombine.low %v228, %v232
    %v241 = vmul.f32 %v44, %v237
    %v242 = vmul.f32 %v45, %v238
    %243 = vrot.lane.b32.xlu0 %v44, 127
    %v244 = vpop.permute.xlu0 %243
    %245 = vrot.lane.b32.xlu0 %v49, 127
    %v246 = vpop.permute.xlu0 %245
    %247 = vrot.lane.b32.xlu0 %v45, 127
    %v248 = vpop.permute.xlu0 %247
    %249 = vrot.lane.b32.xlu0 %v50, 127
    %v250 = vpop.permute.xlu0 %249
    %vm251 = vcmp.lt.s32.totalorder %v62, 127
    %v252 = vsel %vm251, %v248, %v250
    %v253 = vsel %vm251, %v246, %v248
    %v254 = vsel %vm251, %v244, %v246
    %v255 = vsel %vm251, %v250, %v244
    %s256 = scalar_lea.vmem [#allocation2], 5
    %v257 = vld [vmem:[%s256] ss:$8 sm:$0xf]
    %v259 = vlaneseq
    %v260 = vshrl.u32 %v259, 7
    %v261 = vsub.s32 0, %v260
    %v262 = vrot.slane %v257, %v261
    %v263 = vlaneseq
    %v264 = vshrl.u32 %v263, 7
    %v265 = vsub.s32 1, %v264
    %v266 = vrot.slane %v257, %v265
    %v267 = vlaneseq
    %v268 = vshrl.u32 %v267, 7
    %v269 = vsub.s32 2, %v268
    %v270 = vrot.slane %v257, %v269
    %v271 = vlaneseq
    %v272 = vshrl.u32 %v271, 7
    %v273 = vsub.s32 3, %v272
    %v274 = vrot.slane %v257, %v273
    %v279 = vmul.f32 %v254, %v262
    %v280 = vmul.f32 %v253, %v266
    %v281 = vmul.f32 %v252, %v270
    %v282 = vmul.f32 %v255, %v274
    %283 = vrot.lane.b32.xlu0 %v44, 113
    %v284 = vpop.permute.xlu0 %283
    %285 = vrot.lane.b32.xlu0 %v49, 113
    %v286 = vpop.permute.xlu0 %285
    %287 = vrot.lane.b32.xlu0 %v45, 113
    %v288 = vpop.permute.xlu0 %287
    %289 = vrot.lane.b32.xlu0 %v50, 113
    %v290 = vpop.permute.xlu0 %289
    %vm291 = vcmp.lt.s32.totalorder %v62, 113
    %v292 = vsel %vm291, %v288, %v290
    %v293 = vsel %vm291, %v286, %v288
    %v294 = vsel %vm291, %v284, %v286
    %v295 = vsel %vm291, %v290, %v284
    %s296 = scalar_lea.vmem [#allocation2], 6
    %v297 = vld [vmem:[%s296] ss:$8 sm:$0xf]
    %v299 = vlaneseq
    %v300 = vshrl.u32 %v299, 7
    %v301 = vsub.s32 0, %v300
    %v302 = vrot.slane %v297, %v301
    %v303 = vlaneseq
    %v304 = vshrl.u32 %v303, 7
    %v305 = vsub.s32 1, %v304
    %v306 = vrot.slane %v297, %v305
    %v307 = vlaneseq
    %v308 = vshrl.u32 %v307, 7
    %v309 = vsub.s32 2, %v308
    %v310 = vrot.slane %v297, %v309
    %v311 = vlaneseq
    %v312 = vshrl.u32 %v311, 7
    %v313 = vsub.s32 3, %v312
    %v314 = vrot.slane %v297, %v313
    %v319 = vmul.f32 %v294, %v302
    %v320 = vmul.f32 %v293, %v306
    %v321 = vmul.f32 %v292, %v310
    %v322 = vmul.f32 %v295, %v314
    %323 = vrot.lane.b32.xlu0 %v44, 112
    %v324 = vpop.permute.xlu0 %323
    %325 = vrot.lane.b32.xlu0 %v49, 112
    %v326 = vpop.permute.xlu0 %325
    %327 = vrot.lane.b32.xlu0 %v45, 112
    %v328 = vpop.permute.xlu0 %327
    %329 = vrot.lane.b32.xlu0 %v50, 112
    %v330 = vpop.permute.xlu0 %329
    %vm331 = vcmp.lt.s32.totalorder %v62, 112
    %v332 = vsel %vm331, %v328, %v330
    %v333 = vsel %vm331, %v326, %v328
    %v334 = vsel %vm331, %v324, %v326
    %v335 = vsel %vm331, %v330, %v324
    %s336 = scalar_lea.vmem [#allocation2], 7
    %v337 = vld [vmem:[%s336] ss:$8 sm:$0xf]
    %v339 = vlaneseq
    %v340 = vshrl.u32 %v339, 7
    %v341 = vsub.s32 0, %v340
    %v342 = vrot.slane %v337, %v341
    %v343 = vlaneseq
    %v344 = vshrl.u32 %v343, 7
    %v345 = vsub.s32 1, %v344
    %v346 = vrot.slane %v337, %v345
    %v347 = vlaneseq
    %v348 = vshrl.u32 %v347, 7
    %v349 = vsub.s32 2, %v348
    %v350 = vrot.slane %v337, %v349
    %v351 = vlaneseq
    %v352 = vshrl.u32 %v351, 7
    %v353 = vsub.s32 3, %v352
    %v354 = vrot.slane %v337, %v353
    %v359 = vmul.f32 %v334, %v342
    %v360 = vmul.f32 %v333, %v346
    %v361 = vmul.f32 %v332, %v350
    %v362 = vmul.f32 %v335, %v354
    %363 = vrot.lane.b32.xlu0 %v44, 111
    %v364 = vpop.permute.xlu0 %363
    %365 = vrot.lane.b32.xlu0 %v49, 111
    %v366 = vpop.permute.xlu0 %365
    %367 = vrot.lane.b32.xlu0 %v45, 111
    %v368 = vpop.permute.xlu0 %367
    %369 = vrot.lane.b32.xlu0 %v50, 111
    %v370 = vpop.permute.xlu0 %369
    %vm371 = vcmp.lt.s32.totalorder %v62, 111
    %v372 = vsel %vm371, %v368, %v370
    %v373 = vsel %vm371, %v366, %v368
    %v374 = vsel %vm371, %v364, %v366
    %v375 = vsel %vm371, %v370, %v364
    %s376 = scalar_lea.vmem [#allocation2], 32
    %v377 = vld [vmem:[%s376] ss:$8 sm:$0xf]
    %v379 = vlaneseq
    %v380 = vshrl.u32 %v379, 7
    %v381 = vsub.s32 0, %v380
    %v382 = vrot.slane %v377, %v381
    %v383 = vlaneseq
    %v384 = vshrl.u32 %v383, 7
    %v385 = vsub.s32 1, %v384
    %v386 = vrot.slane %v377, %v385
    %v387 = vlaneseq
    %v388 = vshrl.u32 %v387, 7
    %v389 = vsub.s32 2, %v388
    %v390 = vrot.slane %v377, %v389
    %v391 = vlaneseq
    %v392 = vshrl.u32 %v391, 7
    %v393 = vsub.s32 3, %v392
    %v394 = vrot.slane %v377, %v393
    %v399 = vmul.f32 %v374, %v382
    %v400 = vmul.f32 %v373, %v386
    %v401 = vmul.f32 %v372, %v390
    %v402 = vmul.f32 %v375, %v394
    %v407 = vrot.slane %v130, 4
    %v408 = vrot.slane %v131, 4
    %v409 = vrot.slane %v132, 4
    %v410 = vrot.slane %v133, 4
    %v419 = vrot.slane %v210, 4
    %v420 = vrot.slane %v211, 4
    %v421 = vrot.slane %v212, 4
    %v422 = vrot.slane %v213, 4
    %v429 = vcombine.high %v241, %v241
    %v430 = vcombine.high %v242, %v242
    %v437 = vrot.slane %v279, 4
    %v438 = vrot.slane %v280, 4
    %v439 = vrot.slane %v281, 4
    %v440 = vrot.slane %v282, 4
    %v449 = vrot.slane %v359, 4
    %v450 = vrot.slane %v360, 4
    %v451 = vrot.slane %v361, 4
    %v452 = vrot.slane %v362, 4
    %vm457 = vcmask 1043456
    %v458 = vsel %vm457, %v90, %v407
    %v459 = vsel %vm457, %v91, %v408
    %v460 = vsel %vm457, %v92, %v409
    %v461 = vsel %vm457, %v93, %v410
    %v462 = vsel %vm457, %v170, %v419
    %v463 = vsel %vm457, %v171, %v420
    %v464 = vsel %vm457, %v172, %v421
    %v465 = vsel %vm457, %v173, %v422
    %v466 = vsel %vm457, %v241, %v437
    %v467 = vsel %vm457, %v429, %v438
    %v468 = vsel %vm457, %v242, %v439
    %v469 = vsel %vm457, %v430, %v440
    %v470 = vsel %vm457, %v319, %v449
    %v471 = vsel %vm457, %v320, %v450
    %v472 = vsel %vm457, %v321, %v451
    %v473 = vsel %vm457, %v322, %v452
    %vm474 = vcmask 293888
    %v476 = vsel %vm474, %v46, 0
    %v479 = vsel %vm457, %v399, 0
    %v482 = vsel %vm457, %v400, 0
    %v485 = vsel %vm457, %v401, 0
    %v488 = vsel %vm457, %v402, 0
    %490 = vmatprep.subr.mxu0 0.0
    %491 = vmatpush1.msra.mxu0 0.0
    %492 = vmatprep.subr.mxu0 0.0
    %493 = vmatpush1.msra.mxu0 0.0
    %494 = vmatprep.subr.mxu0 0.0
    %495 = vmatpush1.msra.mxu0 0.0
    %496 = vmatprep.subr.mxu0 0.0
    %497 = vmatpush1.msra.mxu0 0.0
    %498 = vmatprep.subr.mxu0 0.0
    %499 = vmatpush1.msra.mxu0 0.0
    %500 = vmatprep.subr.mxu0 0.0
    %501 = vmatpush1.msra.mxu0 0.0
    %502 = vmatprep.subr.mxu0 0.0
    %503 = vmatpush1.msra.mxu0 0.0
    %504 = vmatprep.subr.mxu0 0.0
    %505 = vmatpush1.msra.mxu0 0.0
    %506 = vmatprep.subr.mxu0 0.0
    %507 = vmatpush1.msra.mxu0 0.0
    %508 = vmatprep.subr.mxu0 0.0
    %509 = vmatpush1.msra.mxu0 0.0
    %510 = vmatprep.subr.mxu0 0.0
    %511 = vmatpush1.msra.mxu0 0.0
    %512 = vmatprep.subr.mxu0 %v482
    %513 = vmatpush1.msra.mxu0 %v479
    %514 = vmatprep.subr.mxu0 %v471
    %515 = vmatpush1.msra.mxu0 %v470
    %516 = vmatprep.subr.mxu0 %v467
    %517 = vmatpush1.msra.mxu0 %v466
    %518 = vmatprep.subr.mxu0 %v463
    %519 = vmatpush1.msra.mxu0 %v462
    %520 = vmatprep.subr.mxu0 %v459
    %521 = vmatpush1.msra.mxu0 %v458
    %522 = vmatprep.subr.mxu0 0.0
    %523 = vmatpush2.msra.mxu0 0.0
    %524 = vmatprep.subr.mxu0 0.0
    %525 = vmatpush2.msra.mxu0 0.0
    %526 = vmatprep.subr.mxu0 0.0
    %527 = vmatpush2.msra.mxu0 0.0
    %528 = vmatprep.subr.mxu0 0.0
    %529 = vmatpush2.msra.mxu0 0.0
    %530 = vmatprep.subr.mxu0 0.0
    %531 = vmatpush2.msra.mxu0 0.0
    %532 = vmatprep.subr.mxu0 0.0
    %533 = vmatpush2.msra.mxu0 0.0
    %534 = vmatprep.subr.mxu0 0.0
    %535 = vmatpush2.msra.mxu0 0.0
    %536 = vmatprep.subr.mxu0 0.0
    %537 = vmatpush2.msra.mxu0 0.0
    %538 = vmatprep.subr.mxu0 0.0
    %539 = vmatpush2.msra.mxu0 0.0
    %540 = vmatprep.subr.mxu0 0.0
    %541 = vmatpush2.msra.mxu0 0.0
    %542 = vmatprep.subr.mxu0 0.0
    %543 = vmatpush2.msra.mxu0 0.0
    %544 = vmatprep.subr.mxu0 0.0
    %545 = vmatpush2.msra.mxu0 0.0
    %546 = vmatprep.subr.mxu0 0.0
    %547 = vmatpush2.msra.mxu0 0.0
    %548 = vmatprep.subr.mxu0 0.0
    %549 = vmatpush2.msra.mxu0 0.0
    %550 = vmatprep.subr.mxu0 0.0
    %551 = vmatpush2.msra.mxu0 0.0
    %552 = vmatprep.subr.mxu0 0.0
    %553 = vmatpush2.msra.mxu0 0.0
    %554 = vmatprep.mubr.f32.mxu0 0.0
    %555 = vmatmul.mubr.f32.gmra.mxu0 %v476
    %v556 = vpop.f32.mrf.mxu0
    %v557 = vadd.f32 0.0, %v556
    %v558 = vpop.f32.mrf.mxu0
    %v559 = vadd.f32 0.0, %v558
    %560 = vdwg.mxu0
    %561 = vmatprep.subr.mxu0 0.0
    %562 = vmatpush1.msra.mxu0 0.0
    %563 = vmatprep.subr.mxu0 0.0
    %564 = vmatpush1.msra.mxu0 0.0
    %565 = vmatprep.subr.mxu0 0.0
    %566 = vmatpush1.msra.mxu0 0.0
    %567 = vmatprep.subr.mxu0 0.0
    %568 = vmatpush1.msra.mxu0 0.0
    %569 = vmatprep.subr.mxu0 0.0
    %570 = vmatpush1.msra.mxu0 0.0
    %571 = vmatprep.subr.mxu0 0.0
    %572 = vmatpush1.msra.mxu0 0.0
    %573 = vmatprep.subr.mxu0 0.0
    %574 = vmatpush1.msra.mxu0 0.0
    %575 = vmatprep.subr.mxu0 0.0
    %576 = vmatpush1.msra.mxu0 0.0
    %577 = vmatprep.subr.mxu0 0.0
    %578 = vmatpush1.msra.mxu0 0.0
    %579 = vmatprep.subr.mxu0 0.0
    %580 = vmatpush1.msra.mxu0 0.0
    %581 = vmatprep.subr.mxu0 0.0
    %582 = vmatpush1.msra.mxu0 0.0
    %583 = vmatprep.subr.mxu0 %v488
    %584 = vmatpush1.msra.mxu0 %v485
    %585 = vmatprep.subr.mxu0 %v473
    %586 = vmatpush1.msra.mxu0 %v472
    %587 = vmatprep.subr.mxu0 %v469
    %588 = vmatpush1.msra.mxu0 %v468
    %589 = vmatprep.subr.mxu0 %v465
    %590 = vmatpush1.msra.mxu0 %v464
    %591 = vmatprep.subr.mxu0 %v461
    %592 = vmatpush1.msra.mxu0 %v460
    %593 = vmatprep.subr.mxu0 0.0
    %594 = vmatpush2.msra.mxu0 0.0
    %595 = vmatprep.subr.mxu0 0.0
    %596 = vmatpush2.msra.mxu0 0.0
    %597 = vmatprep.subr.mxu0 0.0
    %598 = vmatpush2.msra.mxu0 0.0
    %599 = vmatprep.subr.mxu0 0.0
    %600 = vmatpush2.msra.mxu0 0.0
    %601 = vmatprep.subr.mxu0 0.0
    %602 = vmatpush2.msra.mxu0 0.0
    %603 = vmatprep.subr.mxu0 0.0
    %604 = vmatpush2.msra.mxu0 0.0
    %605 = vmatprep.subr.mxu0 0.0
    %606 = vmatpush2.msra.mxu0 0.0
    %607 = vmatprep.subr.mxu0 0.0
    %608 = vmatpush2.msra.mxu0 0.0
    %609 = vmatprep.subr.mxu0 0.0
    %610 = vmatpush2.msra.mxu0 0.0
    %611 = vmatprep.subr.mxu0 0.0
    %612 = vmatpush2.msra.mxu0 0.0
    %613 = vmatprep.subr.mxu0 0.0
    %614 = vmatpush2.msra.mxu0 0.0
    %615 = vmatprep.subr.mxu0 0.0
    %616 = vmatpush2.msra.mxu0 0.0
    %617 = vmatprep.subr.mxu0 0.0
    %618 = vmatpush2.msra.mxu0 0.0
    %619 = vmatprep.subr.mxu0 0.0
    %620 = vmatpush2.msra.mxu0 0.0
    %621 = vmatprep.subr.mxu0 0.0
    %622 = vmatpush2.msra.mxu0 0.0
    %623 = vmatprep.subr.mxu0 0.0
    %624 = vmatpush2.msra.mxu0 0.0
    %625 = vmatprep.mubr.f32.mxu0 0.0
    %626 = vmatmul.mubr.f32.gmra.mxu0 %v476
    %v627 = vpop.f32.mrf.mxu0
    %v628 = vadd.f32 0.0, %v627
    %v629 = vpop.f32.mrf.mxu0
    %v630 = vadd.f32 0.0, %v629
    %631 = vdwg.mxu0
    %v632 = vld [vmem:[%s3] sm:$0xf]
    %v633 = vld [vmem:[%s4] sm:$0xf]
    %v634 = vsel %vm457, %v557, 0.0
    %v635 = vsel %vm457, %v559, 0.0
    %v636 = vadd.f32 %v634, %v635
    %v637 = vsel %vm457, %v628, 0.0
    %v638 = vadd.f32 %v636, %v637
    %v639 = vsel %vm457, %v630, 0.0
    %v640 = vadd.f32 %v638, %v639
    %641 = vadd.xlane.f32.xlu0 %v640
    %v642 = vpop.xlane.xlu0 %641
    %v643 = vrcp.pop 512.0
    %v644 = vmul.f32 %v642, %v643
    %v645 = vsub.f32 %v557, %v644
    %v646 = vsub.f32 %v559, %v644
    %v647 = vsub.f32 %v628, %v644
    %v648 = vsub.f32 %v630, %v644
    %v649 = vmul.f32 %v645, %v645
    %v650 = vmul.f32 %v646, %v646
    %v651 = vmul.f32 %v647, %v647
    %v652 = vmul.f32 %v648, %v648
    %v653 = vsel %vm457, %v649, 0.0
    %v654 = vsel %vm457, %v650, 0.0
    %v655 = vadd.f32 %v653, %v654
    %v656 = vsel %vm457, %v651, 0.0
    %v657 = vadd.f32 %v655, %v656
    %v658 = vsel %vm457, %v652, 0.0
    %v659 = vadd.f32 %v657, %v658
    %660 = vadd.xlane.f32.xlu0 %v659
    %v661 = vpop.xlane.xlu0 %660
    %v662 = vmul.f32 %v661, %v643
    %v663 = vadd.f32 %v662, 1e-05
    %v664 = vrsqrt.pop %v663
    %v665 = vmul.f32 %v632, %v664
    %667 = vset.pattern.permute.xlu0 0
    %668 = vperm.xlu0 %667, %v665
    %v669 = vpop.permute.xlu0 %668
    %v671 = vmul.f32 %v645, %v669
    %v672 = vmul.f32 %v646, %v669
    %v673 = vmul.f32 %v647, %v669
    %v674 = vmul.f32 %v648, %v669
    %676 = vset.pattern.permute.xlu0 0
    %677 = vperm.xlu0 %676, %v633
    %v678 = vpop.permute.xlu0 %677
    %v680 = vadd.f32 %v671, %v678
    %v681 = vadd.f32 %v672, %v678
    %v682 = vadd.f32 %v673, %v678
    %v683 = vadd.f32 %v674, %v678
    %v684 = vmax.f32 %v680, 0.0
    %v685 = vmax.f32 %v681, 0.0
    %v686 = vmax.f32 %v682, 0.0
    %v687 = vmax.f32 %v683, 0.0
    %v688 = vld [vmem:[%s5] sm:$0xf]
    %689 = vrot.lane.b32.xlu0 %v684, 17
    %v690 = vpop.permute.xlu0 %689
    %691 = vrot.lane.b32.xlu0 %v685, 17
    %v692 = vpop.permute.xlu0 %691
    %693 = vrot.lane.b32.xlu0 %v686, 17
    %v694 = vpop.permute.xlu0 %693
    %695 = vrot.lane.b32.xlu0 %v687, 17
    %v696 = vpop.permute.xlu0 %695
    %v697 = vsel %vm63, %v694, %v696
    %v698 = vsel %vm63, %v692, %v694
    %v699 = vsel %vm63, %v690, %v692
    %v700 = vsel %vm63, %v696, %v690
    %v701 = vmul.f32 %v700, %v73
    %v702 = vmul.f32 %v699, %v77
    %v703 = vmul.f32 %v698, %v81
    %v704 = vmul.f32 %v697, %v85
    %705 = vrot.lane.b32.xlu0 %v684, 16
    %v706 = vpop.permute.xlu0 %705
    %707 = vrot.lane.b32.xlu0 %v685, 16
    %v708 = vpop.permute.xlu0 %707
    %709 = vrot.lane.b32.xlu0 %v686, 16
    %v710 = vpop.permute.xlu0 %709
    %711 = vrot.lane.b32.xlu0 %v687, 16
    %v712 = vpop.permute.xlu0 %711
    %v713 = vsel %vm102, %v710, %v712
    %v714 = vsel %vm102, %v708, %v710
    %v715 = vsel %vm102, %v706, %v708
    %v716 = vsel %vm102, %v712, %v706
    %v717 = vmul.f32 %v716, %v113
    %v718 = vmul.f32 %v715, %v117
    %v719 = vmul.f32 %v714, %v121
    %v720 = vmul.f32 %v713, %v125
    %721 = vrot.lane.b32.xlu0 %v684, 15
    %v722 = vpop.permute.xlu0 %721
    %723 = vrot.lane.b32.xlu0 %v685, 15
    %v724 = vpop.permute.xlu0 %723
    %725 = vrot.lane.b32.xlu0 %v686, 15
    %v726 = vpop.permute.xlu0 %725
    %727 = vrot.lane.b32.xlu0 %v687, 15
    %v728 = vpop.permute.xlu0 %727
    %v729 = vsel %vm142, %v726, %v728
    %v730 = vsel %vm142, %v724, %v726
    %v731 = vsel %vm142, %v722, %v724
    %v732 = vsel %vm142, %v728, %v722
    %v733 = vmul.f32 %v732, %v153
    %v734 = vmul.f32 %v731, %v157
    %v735 = vmul.f32 %v730, %v161
    %v736 = vmul.f32 %v729, %v165
    %737 = vrot.lane.b32.xlu0 %v684, 1
    %v738 = vpop.permute.xlu0 %737
    %739 = vrot.lane.b32.xlu0 %v685, 1
    %v740 = vpop.permute.xlu0 %739
    %741 = vrot.lane.b32.xlu0 %v686, 1
    %v742 = vpop.permute.xlu0 %741
    %743 = vrot.lane.b32.xlu0 %v687, 1
    %v744 = vpop.permute.xlu0 %743
    %v745 = vsel %vm182, %v742, %v744
    %v746 = vsel %vm182, %v740, %v742
    %v747 = vsel %vm182, %v738, %v740
    %v748 = vsel %vm182, %v744, %v738
    %v749 = vmul.f32 %v748, %v193
    %v750 = vmul.f32 %v747, %v197
    %v751 = vmul.f32 %v746, %v201
    %v752 = vmul.f32 %v745, %v205
    %v753 = vmul.f32 %v684, %v220
    %v754 = vmul.f32 %v685, %v224
    %v755 = vmul.f32 %v686, %v228
    %v756 = vmul.f32 %v687, %v232
    %757 = vrot.lane.b32.xlu0 %v684, 127
    %v758 = vpop.permute.xlu0 %757
    %759 = vrot.lane.b32.xlu0 %v685, 127
    %v760 = vpop.permute.xlu0 %759
    %761 = vrot.lane.b32.xlu0 %v686, 127
    %v762 = vpop.permute.xlu0 %761
    %763 = vrot.lane.b32.xlu0 %v687, 127
    %v764 = vpop.permute.xlu0 %763
    %v765 = vsel %vm251, %v762, %v764
    %v766 = vsel %vm251, %v760, %v762
    %v767 = vsel %vm251, %v758, %v760
    %v768 = vsel %vm251, %v764, %v758
    %v769 = vmul.f32 %v767, %v262
    %v770 = vmul.f32 %v766, %v266
    %v771 = vmul.f32 %v765, %v270
    %v772 = vmul.f32 %v768, %v274
    %773 = vrot.lane.b32.xlu0 %v684, 113
    %v774 = vpop.permute.xlu0 %773
    %775 = vrot.lane.b32.xlu0 %v685, 113
    %v776 = vpop.permute.xlu0 %775
    %777 = vrot.lane.b32.xlu0 %v686, 113
    %v778 = vpop.permute.xlu0 %777
    %779 = vrot.lane.b32.xlu0 %v687, 113
    %v780 = vpop.permute.xlu0 %779
    %v781 = vsel %vm291, %v778, %v780
    %v782 = vsel %vm291, %v776, %v778
    %v783 = vsel %vm291, %v774, %v776
    %v784 = vsel %vm291, %v780, %v774
    %v785 = vmul.f32 %v783, %v302
    %v786 = vmul.f32 %v782, %v306
    %v787 = vmul.f32 %v781, %v310
    %v788 = vmul.f32 %v784, %v314
    %789 = vrot.lane.b32.xlu0 %v684, 112
    %v790 = vpop.permute.xlu0 %789
    %791 = vrot.lane.b32.xlu0 %v685, 112
    %v792 = vpop.permute.xlu0 %791
    %793 = vrot.lane.b32.xlu0 %v686, 112
    %v794 = vpop.permute.xlu0 %793
    %795 = vrot.lane.b32.xlu0 %v687, 112
    %v796 = vpop.permute.xlu0 %795
    %v797 = vsel %vm331, %v794, %v796
    %v798 = vsel %vm331, %v792, %v794
    %v799 = vsel %vm331, %v790, %v792
    %v800 = vsel %vm331, %v796, %v790
    %v801 = vmul.f32 %v799, %v342
    %v802 = vmul.f32 %v798, %v346
    %v803 = vmul.f32 %v797, %v350
    %v804 = vmul.f32 %v800, %v354
    %805 = vrot.lane.b32.xlu0 %v684, 111
    %v806 = vpop.permute.xlu0 %805
    %807 = vrot.lane.b32.xlu0 %v685, 111
    %v808 = vpop.permute.xlu0 %807
    %809 = vrot.lane.b32.xlu0 %v686, 111
    %v810 = vpop.permute.xlu0 %809
    %811 = vrot.lane.b32.xlu0 %v687, 111
    %v812 = vpop.permute.xlu0 %811
    %v813 = vsel %vm371, %v810, %v812
    %v814 = vsel %vm371, %v808, %v810
    %v815 = vsel %vm371, %v806, %v808
    %v816 = vsel %vm371, %v812, %v806
    %v817 = vmul.f32 %v815, %v382
    %v818 = vmul.f32 %v814, %v386
    %v819 = vmul.f32 %v813, %v390
    %v820 = vmul.f32 %v816, %v394
    %v825 = vrot.slane %v717, 4
    %v826 = vrot.slane %v718, 4
    %v827 = vrot.slane %v719, 4
    %v828 = vrot.slane %v720, 4
    %v837 = vrot.slane %v749, 4
    %v838 = vrot.slane %v750, 4
    %v839 = vrot.slane %v751, 4
    %v840 = vrot.slane %v752, 4
    %v849 = vrot.slane %v769, 4
    %v850 = vrot.slane %v770, 4
    %v851 = vrot.slane %v771, 4
    %v852 = vrot.slane %v772, 4
    %v861 = vrot.slane %v801, 4
    %v862 = vrot.slane %v802, 4
    %v863 = vrot.slane %v803, 4
    %v864 = vrot.slane %v804, 4
    %v869 = vsel %vm457, %v701, %v825
    %v870 = vsel %vm457, %v702, %v826
    %v871 = vsel %vm457, %v703, %v827
    %v872 = vsel %vm457, %v704, %v828
    %v873 = vsel %vm457, %v733, %v837
    %v874 = vsel %vm457, %v734, %v838
    %v875 = vsel %vm457, %v735, %v839
    %v876 = vsel %vm457, %v736, %v840
    %v877 = vsel %vm457, %v753, %v849
    %v878 = vsel %vm457, %v754, %v850
    %v879 = vsel %vm457, %v755, %v851
    %v880 = vsel %vm457, %v756, %v852
    %v881 = vsel %vm457, %v785, %v861
    %v882 = vsel %vm457, %v786, %v862
    %v883 = vsel %vm457, %v787, %v863
    %v884 = vsel %vm457, %v788, %v864
    %v886 = vsel %vm474, %v688, 0
    %v889 = vsel %vm457, %v817, 0
    %v892 = vsel %vm457, %v818, 0
    %v895 = vsel %vm457, %v819, 0
    %v898 = vsel %vm457, %v820, 0
    %900 = vmatprep.subr.mxu0 0.0
    %901 = vmatpush1.msra.mxu0 0.0
    %902 = vmatprep.subr.mxu0 0.0
    %903 = vmatpush1.msra.mxu0 0.0
    %904 = vmatprep.subr.mxu0 0.0
    %905 = vmatpush1.msra.mxu0 0.0
    %906 = vmatprep.subr.mxu0 0.0
    %907 = vmatpush1.msra.mxu0 0.0
    %908 = vmatprep.subr.mxu0 0.0
    %909 = vmatpush1.msra.mxu0 0.0
    %910 = vmatprep.subr.mxu0 0.0
    %911 = vmatpush1.msra.mxu0 0.0
    %912 = vmatprep.subr.mxu0 0.0
    %913 = vmatpush1.msra.mxu0 0.0
    %914 = vmatprep.subr.mxu0 0.0
    %915 = vmatpush1.msra.mxu0 0.0
    %916 = vmatprep.subr.mxu0 0.0
    %917 = vmatpush1.msra.mxu0 0.0
    %918 = vmatprep.subr.mxu0 0.0
    %919 = vmatpush1.msra.mxu0 0.0
    %920 = vmatprep.subr.mxu0 0.0
    %921 = vmatpush1.msra.mxu0 0.0
    %922 = vmatprep.subr.mxu0 %v892
    %923 = vmatpush1.msra.mxu0 %v889
    %924 = vmatprep.subr.mxu0 %v882
    %925 = vmatpush1.msra.mxu0 %v881
    %926 = vmatprep.subr.mxu0 %v878
    %927 = vmatpush1.msra.mxu0 %v877
    %928 = vmatprep.subr.mxu0 %v874
    %929 = vmatpush1.msra.mxu0 %v873
    %930 = vmatprep.subr.mxu0 %v870
    %931 = vmatpush1.msra.mxu0 %v869
    %932 = vmatprep.subr.mxu0 0.0
    %933 = vmatpush2.msra.mxu0 0.0
    %934 = vmatprep.subr.mxu0 0.0
    %935 = vmatpush2.msra.mxu0 0.0
    %936 = vmatprep.subr.mxu0 0.0
    %937 = vmatpush2.msra.mxu0 0.0
    %938 = vmatprep.subr.mxu0 0.0
    %939 = vmatpush2.msra.mxu0 0.0
    %940 = vmatprep.subr.mxu0 0.0
    %941 = vmatpush2.msra.mxu0 0.0
    %942 = vmatprep.subr.mxu0 0.0
    %943 = vmatpush2.msra.mxu0 0.0
    %944 = vmatprep.subr.mxu0 0.0
    %945 = vmatpush2.msra.mxu0 0.0
    %946 = vmatprep.subr.mxu0 0.0
    %947 = vmatpush2.msra.mxu0 0.0
    %948 = vmatprep.subr.mxu0 0.0
    %949 = vmatpush2.msra.mxu0 0.0
    %950 = vmatprep.subr.mxu0 0.0
    %951 = vmatpush2.msra.mxu0 0.0
    %952 = vmatprep.subr.mxu0 0.0
    %953 = vmatpush2.msra.mxu0 0.0
    %954 = vmatprep.subr.mxu0 0.0
    %955 = vmatpush2.msra.mxu0 0.0
    %956 = vmatprep.subr.mxu0 0.0
    %957 = vmatpush2.msra.mxu0 0.0
    %958 = vmatprep.subr.mxu0 0.0
    %959 = vmatpush2.msra.mxu0 0.0
    %960 = vmatprep.subr.mxu0 0.0
    %961 = vmatpush2.msra.mxu0 0.0
    %962 = vmatprep.subr.mxu0 0.0
    %963 = vmatpush2.msra.mxu0 0.0
    %964 = vmatprep.mubr.f32.mxu0 0.0
    %965 = vmatmul.mubr.f32.gmra.mxu0 %v886
    %v966 = vpop.f32.mrf.mxu0
    %v967 = vadd.f32 0.0, %v966
    %v968 = vpop.f32.mrf.mxu0
    %v969 = vadd.f32 0.0, %v968
    %970 = vdwg.mxu0
    %971 = vmatprep.subr.mxu0 0.0
    %972 = vmatpush1.msra.mxu0 0.0
    %973 = vmatprep.subr.mxu0 0.0
    %974 = vmatpush1.msra.mxu0 0.0
    %975 = vmatprep.subr.mxu0 0.0
    %976 = vmatpush1.msra.mxu0 0.0
    %977 = vmatprep.subr.mxu0 0.0
    %978 = vmatpush1.msra.mxu0 0.0
    %979 = vmatprep.subr.mxu0 0.0
    %980 = vmatpush1.msra.mxu0 0.0
    %981 = vmatprep.subr.mxu0 0.0
    %982 = vmatpush1.msra.mxu0 0.0
    %983 = vmatprep.subr.mxu0 0.0
    %984 = vmatpush1.msra.mxu0 0.0
    %985 = vmatprep.subr.mxu0 0.0
    %986 = vmatpush1.msra.mxu0 0.0
    %987 = vmatprep.subr.mxu0 0.0
    %988 = vmatpush1.msra.mxu0 0.0
    %989 = vmatprep.subr.mxu0 0.0
    %990 = vmatpush1.msra.mxu0 0.0
    %991 = vmatprep.subr.mxu0 0.0
    %992 = vmatpush1.msra.mxu0 0.0
    %993 = vmatprep.subr.mxu0 %v898
    %994 = vmatpush1.msra.mxu0 %v895
    %995 = vmatprep.subr.mxu0 %v884
    %996 = vmatpush1.msra.mxu0 %v883
    %997 = vmatprep.subr.mxu0 %v880
    %998 = vmatpush1.msra.mxu0 %v879
    %999 = vmatprep.subr.mxu0 %v876
    %1000 = vmatpush1.msra.mxu0 %v875
    %1001 = vmatprep.subr.mxu0 %v872
    %1002 = vmatpush1.msra.mxu0 %v871
    %1003 = vmatprep.subr.mxu0 0.0
    %1004 = vmatpush2.msra.mxu0 0.0
    %1005 = vmatprep.subr.mxu0 0.0
    %1006 = vmatpush2.msra.mxu0 0.0
    %1007 = vmatprep.subr.mxu0 0.0
    %1008 = vmatpush2.msra.mxu0 0.0
    %1009 = vmatprep.subr.mxu0 0.0
    %1010 = vmatpush2.msra.mxu0 0.0
    %1011 = vmatprep.subr.mxu0 0.0
    %1012 = vmatpush2.msra.mxu0 0.0
    %1013 = vmatprep.subr.mxu0 0.0
    %1014 = vmatpush2.msra.mxu0 0.0
    %1015 = vmatprep.subr.mxu0 0.0
    %1016 = vmatpush2.msra.mxu0 0.0
    %1017 = vmatprep.subr.mxu0 0.0
    %1018 = vmatpush2.msra.mxu0 0.0
    %1019 = vmatprep.subr.mxu0 0.0
    %1020 = vmatpush2.msra.mxu0 0.0
    %1021 = vmatprep.subr.mxu0 0.0
    %1022 = vmatpush2.msra.mxu0 0.0
    %1023 = vmatprep.subr.mxu0 0.0
    %1024 = vmatpush2.msra.mxu0 0.0
    %1025 = vmatprep.subr.mxu0 0.0
    %1026 = vmatpush2.msra.mxu0 0.0
    %1027 = vmatprep.subr.mxu0 0.0
    %1028 = vmatpush2.msra.mxu0 0.0
    %1029 = vmatprep.subr.mxu0 0.0
    %1030 = vmatpush2.msra.mxu0 0.0
    %1031 = vmatprep.subr.mxu0 0.0
    %1032 = vmatpush2.msra.mxu0 0.0
    %1033 = vmatprep.subr.mxu0 0.0
    %1034 = vmatpush2.msra.mxu0 0.0
    %1035 = vmatprep.mubr.f32.mxu0 0.0
    %1036 = vmatmul.mubr.f32.gmra.mxu0 %v886
    %v1037 = vpop.f32.mrf.mxu0
    %v1038 = vadd.f32 0.0, %v1037
    %v1039 = vpop.f32.mrf.mxu0
    %v1040 = vadd.f32 0.0, %v1039
    %1041 = vdwg.mxu0
    %v1042 = vld [vmem:[%s6] sm:$0xf]
    %v1043 = vld [vmem:[%s7] sm:$0xf]
    %v1044 = vsel %vm457, %v967, 0.0
    %v1045 = vsel %vm457, %v969, 0.0
    %v1046 = vadd.f32 %v1044, %v1045
    %v1047 = vsel %vm457, %v1038, 0.0
    %v1048 = vadd.f32 %v1046, %v1047
    %v1049 = vsel %vm457, %v1040, 0.0
    %v1050 = vadd.f32 %v1048, %v1049
    %1051 = vadd.xlane.f32.xlu0 %v1050
    %v1052 = vpop.xlane.xlu0 %1051
    %v1053 = vmul.f32 %v1052, %v643
    %v1054 = vsub.f32 %v967, %v1053
    %v1055 = vsub.f32 %v969, %v1053
    %v1056 = vsub.f32 %v1038, %v1053
    %v1057 = vsub.f32 %v1040, %v1053
    %v1058 = vmul.f32 %v1054, %v1054
    %v1059 = vmul.f32 %v1055, %v1055
    %v1060 = vmul.f32 %v1056, %v1056
    %v1061 = vmul.f32 %v1057, %v1057
    %v1062 = vsel %vm457, %v1058, 0.0
    %v1063 = vsel %vm457, %v1059, 0.0
    %v1064 = vadd.f32 %v1062, %v1063
    %v1065 = vsel %vm457, %v1060, 0.0
    %v1066 = vadd.f32 %v1064, %v1065
    %v1067 = vsel %vm457, %v1061, 0.0
    %v1068 = vadd.f32 %v1066, %v1067
    %1069 = vadd.xlane.f32.xlu0 %v1068
    %v1070 = vpop.xlane.xlu0 %1069
    %v1071 = vmul.f32 %v1070, %v643
    %v1072 = vadd.f32 %v1071, 1e-05
    %v1073 = vrsqrt.pop %v1072
    %v1074 = vmul.f32 %v1042, %v1073
    %1076 = vset.pattern.permute.xlu0 0
    %1077 = vperm.xlu0 %1076, %v1074
    %v1078 = vpop.permute.xlu0 %1077
    %v1080 = vmul.f32 %v1054, %v1078
    %v1081 = vmul.f32 %v1055, %v1078
    %v1082 = vmul.f32 %v1056, %v1078
    %v1083 = vmul.f32 %v1057, %v1078
    %1085 = vset.pattern.permute.xlu0 0
    %1086 = vperm.xlu0 %1085, %v1043
    %v1087 = vpop.permute.xlu0 %1086
    %v1089 = vadd.f32 %v1080, %v1087
    %v1090 = vadd.f32 %v1081, %v1087
    %v1091 = vadd.f32 %v1082, %v1087
    %v1092 = vadd.f32 %v1083, %v1087
    %v1093 = vadd.f32 %v1089, %v44
    %v1094 = vadd.f32 %v1090, %v49
    %v1095 = vadd.f32 %v1091, %v45
    %v1096 = vadd.f32 %v1092, %v50
    %v1097 = vmax.f32 %v1093, 0.0
    %v1098 = vmax.f32 %v1094, 0.0
    %v1099 = vmax.f32 %v1095, 0.0
    %v1100 = vmax.f32 %v1096, 0.0
    %v1105 = vcombine.low %v1097, %v1098
    %v1106 = vcombine.low %v1099, %v1100
    %1109 = vst [vmem:[#allocation5] sm:$0xff] %v1105
    %1110 = vst [vmem:[#allocation5 + $0x8] sm:$0xff] %v1106
    // Predicated region
    $region38: #{tpu_custom_call.1} parent=1 // pred_check
      _
    $region39: #{tpu_custom_call.1} parent=1 // pred_check_branch
      %1112 = sbr.rel (0) target = $region41
    $region40: #{tpu_custom_call.1} parent=1 // pred_region
      %s1114 = ssub.s32 256, 256
      %1115 = vsyncadd [#allocation4], %s1114
      %s1117 = sshll.u32 [#allocation5], 4
      %s1118 = int_to_ptr.vmem [resolvable:$true] %s1117
      %1120 = dma.vmem_to_hbm [thread:$0]  %s1118, 256, %s8, [#allocation4]
    $region41: #{tpu_custom_call.1} parent=1 // pred_fallthru
      _
    // Predicated region
    $region42: #{tpu_custom_call.1} parent=1 // pred_check
      _
    $region43: #{tpu_custom_call.1} parent=1 // pred_check_branch
      %1122 = sbr.rel (0) target = $region45
    $region44: #{tpu_custom_call.1} parent=1 // pred_region
      %1123 = dma.done [#allocation4], 256
    $region45: #{tpu_custom_call.1} parent=1 // pred_fallthru
      _
    %1124 = vsyncpa [#allocation3], 1
    %1125 = vsyncpa [#allocation4], 1

</llo_original>
